<compile_context>
chip_gen: v7x
topology: tpu7x:2x2x1
jax: 0.10.0
libtpu: 0.0.40
codegen_flags: <defaults>
</compile_context>

<pallas_src>
import functools

import jax
import jax.numpy as jnp
from jax.experimental import pallas as pl
from jax.experimental.pallas import tpu as pltpu


_MAX_TILE_N = 32768                       # lane cap per grid step
_INPUT_VMEM_BUDGET = 24 * 1024 * 1024     # double-buffered input budget
_VMEM_LIMIT_FLOOR = 32 * 1024 * 1024      # raise v5e's 16 MiB default scoped limit
_VMEM_LIMIT_CAP = 48 * 1024 * 1024        # stay well under v7x's 64 MiB physical VMEM


def _tversky_stats_kernel(x_ref, y_ref, out_ref, *, hw, n_tiles, half_tiles,
                          needs_tail, needs_guard):
    # x_ref:   (C, TN)      logits tile (any float dtype; upcast here)
    # y_ref:   (1, TN)      integer label tile (native dtype; upcast here)
    # out_ref: (2, C, 128)  resident accumulator: [tp, sumP] per-lane-group sums
    c_split = pl.program_id(0)   # core-split axis ("parallel")
    b = pl.program_id(1)         # batch axis (reduced)
    i = pl.program_id(2)         # HW-tile axis within this split (reduced)

    @pl.when((b == 0) & (i == 0))
    def _init():
        out_ref[...] = jnp.zeros_like(out_ref)

    C, TN = x_ref.shape
    t = c_split * half_tiles + i            # global (unclamped) HW-tile index

    def fold(a):
        # (C, TN) -> (C, 128): tree-add 128-aligned lane groups (pure VPU adds,
        # no XLU relayout, no sub-128 stores).
        parts = [a[:, j * 128:(j + 1) * 128] for j in range(TN // 128)]
        while len(parts) > 1:
            nxt = [parts[j] + parts[j + 1] for j in range(0, len(parts) - 1, 2)]
            if len(parts) % 2:
                nxt.append(parts[-1])
            parts = nxt
        return parts[0]

    def softmax_c(x):
        # Softmax over the channel (sublane) axis == softmax_helper over dim 1.
        m = jnp.max(x, axis=0, keepdims=True)
        e = jnp.exp(x - m)
        inv = pl.reciprocal(jnp.sum(e, axis=0, keepdims=True), approx=True)
        return e * inv

    def load_labels():
        y = y_ref[...]
        if y.dtype != jnp.int32:
            y = y.astype(jnp.int32)          # upcast small label dtypes in-kernel
        return y                             # (1, TN)

    def accumulate(tp, p):
        out_ref[0] = out_ref[0] + fold(tp)
        out_ref[1] = out_ref[1] + fold(p)

    def full_body():                         # unmasked fast path (full tiles)
        x = x_ref[...].astype(jnp.float32)   # (C, TN)
        y = load_labels()
        p = softmax_c(x)
        ch = jax.lax.broadcasted_iota(jnp.int32, (C, TN), 0)
        tp = jnp.where(ch == y, p, 0.0)      # fused one-hot select
        accumulate(tp, p)

    def tail_body():                         # last (ragged) tile only
        x = x_ref[...].astype(jnp.float32)
        y = load_labels()
        lane = jax.lax.broadcasted_iota(jnp.int32, (1, TN), 1)
        valid = (lane + t * TN) < hw         # (1, TN) bool
        x = jnp.where(valid, x, 0.0)         # keep softmax finite on padding
        p = jnp.where(valid, softmax_c(x), 0.0)
        ch = jax.lax.broadcasted_iota(jnp.int32, (C, TN), 0)
        tp = jnp.where(ch == y, p, 0.0)      # p already zeroed on padded columns
        accumulate(tp, p)

    if needs_tail:
        @pl.when(t < n_tiles - 1)
        def _full():
            full_body()

        @pl.when(t == n_tiles - 1)
        def _tail():
            tail_body()
    elif needs_guard:
        @pl.when(t < n_tiles)                # skip wasted split-tail steps
        def _full():
            full_body()
    else:
        full_body()


def _default_num_core_splits():
    # 2 TensorCores per chip only on v7x; the split axis is pure serial
    # overhead on single-TC v5e / v6e.
    try:
        kind = jax.devices()[0].device_kind.lower()
    except Exception:
        return 1
    return 2 if ("v7" in kind or "7x" in kind) else 1


def focal_tversky_loss(net_output, target, *, gamma=0.75, smooth=1.0,
                       alpha=0.3, beta=0.7, tile_n=None, num_core_splits=None):
    """net_output: (B, C, H, W) float; target: (B, H, W) or (B, 1, H, W) int labels.

    Pass uint8/int8 label maps to cut label HBM traffic; they are upcast in-kernel.
    """
    B, C, H, W = net_output.shape
    HW = H * W

    x_bytes = jnp.dtype(net_output.dtype).itemsize
    lbl_bytes = jnp.dtype(target.dtype).itemsize

    # Free reshapes only — no transpose, no pad, no forced dtype cast.
    x3 = net_output.reshape(B, C, HW)
    y3 = target.reshape(B, 1, HW)

    # --- tile sizing: as large as VMEM budget / row length allow ------------
    hw_rounded = ((HW + 127) // 128) * 128
    per_lane = 2 * (C * x_bytes + lbl_bytes)            # double-buffered bytes/lane
    budget_cap = max(128, (_INPUT_VMEM_BUDGET // per_lane) // 128 * 128)
    want = _MAX_TILE_N if tile_n is None else max(128, (int(tile_n) // 128) * 128)
    tile_n = max(128, min(want, budget_cap, hw_rounded))

    n_tiles = (HW + tile_n - 1) // tile_n
    n_splits = _default_num_core_splits() if num_core_splits is None else int(num_core_splits)
    n_splits = max(1, min(n_splits, n_tiles))
    half_tiles = (n_tiles + n_splits - 1) // n_splits

    needs_tail = (HW % tile_n) != 0
    needs_guard = (n_splits * half_tiles) != n_tiles

    vmem_limit = int(min(_VMEM_LIMIT_CAP,
                         max(_VMEM_LIMIT_FLOOR,
                             per_lane * tile_n                    # input double-buffers
                             + 2 * (2 * C * 128 * 4)              # output blocks
                             + (8 << 20))))                       # headroom / scratch

    def xy_map(c, b, i):
        t = jnp.minimum(c * half_tiles + i, n_tiles - 1)  # clamp; skipped in-kernel
        return (b, 0, t)

    def o_map(c, b, i):
        return (c, 0, 0, 0)

    kernel = functools.partial(
        _tversky_stats_kernel, hw=HW, n_tiles=n_tiles, half_tiles=half_tiles,
        needs_tail=needs_tail, needs_guard=needs_guard)

    stats = pl.pallas_call(
        kernel,
        out_shape=jax.ShapeDtypeStruct((n_splits, 2, C, 128), jnp.float32),
        grid_spec=pltpu.PrefetchScalarGridSpec(
            num_scalar_prefetch=0,
            grid=(n_splits, B, half_tiles),
            in_specs=[
                pl.BlockSpec((pl.Squeezed(), C, tile_n), xy_map),
                pl.BlockSpec((pl.Squeezed(), 1, tile_n), xy_map),
            ],
            out_specs=pl.BlockSpec((pl.Squeezed(), 2, C, 128), o_map),
        ),
        compiler_params=pltpu.CompilerParams(
            dimension_semantics=("parallel", "arbitrary", "arbitrary"),
            vmem_limit_bytes=vmem_limit),
    )(x3, y3)

    # --- tiny reductions / ratio / focal power stay in JAX glue -------------
    stats = jnp.sum(stats, axis=(0, 3))                   # (2, C): [tp, sumP]
    tp = stats[0]
    sum_p = stats[1]

    # Per-channel pixel counts hoisted out of the kernel (labels only; compare
    # + reduce fuses in XLA, labels outside [0, C) contribute zero as before).
    y_flat = y3.reshape(-1).astype(jnp.int32)
    cnt = jnp.sum((y_flat[:, None] == jnp.arange(C, dtype=jnp.int32)[None, :])
                  .astype(jnp.float32), axis=0)           # (C,)

    fp = sum_p - tp                                       # sum(p * (1 - onehot))
    fn = cnt - tp                                         # sum((1 - p) * onehot)

    tversky = (tp + smooth) / (tp + alpha * fp + beta * fn + smooth)  # (C,)
    tversky_loss = 1.0 - jnp.mean(tversky)
    return jnp.power(tversky_loss, gamma)


def _reference_jax(net_output, target, gamma=0.75, smooth=1.0, alpha=0.3, beta=0.7):
    # pure-JAX reference for sanity checking
    x = jax.nn.softmax(net_output.astype(jnp.float32), axis=1)
    C = x.shape[1]
    onehot = jax.nn.one_hot(target, C, dtype=jnp.float32)          # (B,H,W,C)
    onehot = jnp.transpose(onehot, (0, 3, 1, 2))                   # (B,C,H,W)
    axes = (0, 2, 3)
    tp = jnp.sum(x * onehot, axis=axes)
    fp = jnp.sum(x * (1 - onehot), axis=axes)
    fn = jnp.sum((1 - x) * onehot, axis=axes)
    tversky = (tp + smooth) / (tp + alpha * fp + beta * fn + smooth)
    return jnp.power(1.0 - jnp.mean(tversky), gamma)


if __name__ == "__main__":
    key = jax.random.PRNGKey(0)
    k1, k2 = jax.random.split(key)
    B, C, H, W = 2, 4, 16, 16
    net_output = jax.random.normal(k1, (B, C, H, W), dtype=jnp.float32)
    target = jax.random.randint(k2, (B, H, W), 0, C, dtype=jnp.int32)

    loss = jax.block_until_ready(focal_tversky_loss(net_output, target))
    ref = jax.block_until_ready(_reference_jax(net_output, target))

    # Tolerance relaxed slightly because the kernel uses the EUP approximate
    # reciprocal (pl.reciprocal(approx=True)) in the softmax denominator.
    assert jnp.allclose(loss, ref, atol=2e-3, rtol=2e-3), (loss, ref)

    print("KERNEL_OK")
</pallas_src>

<mosaic_0001>
module attributes {stable_mosaic.version = 11 : i64} {
  func.func @_tversky_stats_kernel(%arg0: i32, %arg1: i32, %arg2: i32, %arg3: memref<1x4x256xf32, #tpu.memory_space<vmem>>, %arg4: memref<1x1x256xi32, #tpu.memory_space<vmem>>, %arg5: memref<1x2x4x128xf32, #tpu.memory_space<vmem>>) attributes {dimension_semantics = [#tpu.dimension_semantics<parallel>, #tpu.dimension_semantics<arbitrary>, #tpu.dimension_semantics<arbitrary>], iteration_bounds = array<i64: 1, 2, 1>, scalar_prefetch = 0 : i64, scratch_operands = 0 : i64, tpu.core_type = #tpu.core_type<tc>, window_params = [{transform_indices = @transform_0, window_bounds = array<i64: 1, 4, 256>}, {transform_indices = @transform_1, window_bounds = array<i64: 1, 1, 256>}, {transform_indices = @transform_2, window_bounds = array<i64: 1, 2, 4, 128>}]} {
    %c0_i32 = arith.constant 0 : i32
    %0 = arith.cmpi eq, %arg1, %c0_i32 : i32
    %c0_i32_0 = arith.constant 0 : i32
    %1 = arith.cmpi eq, %arg2, %c0_i32_0 : i32
    %2 = arith.andi %0, %1 : i1
    %3 = arith.extui %2 : i1 to i32
    %c0_i32_1 = arith.constant 0 : i32
    %4 = arith.cmpi ne, %3, %c0_i32_1 : i32
    scf.if %4 {
      %cst_24 = arith.constant 0.000000e+00 : f32
      %42 = vector.broadcast %cst_24 : f32 to vector<2x4x128xf32>
      %c0_25 = arith.constant 0 : index
      %c0_26 = arith.constant 0 : index
      %c0_27 = arith.constant 0 : index
      %c0_28 = arith.constant 0 : index
      %43 = vector.load %arg5[%c0_25, %c0_26, %c0_27, %c0_28] : memref<1x2x4x128xf32, #tpu.memory_space<vmem>>, vector<1x2x4x128xf32>
      %44 = vector.shape_cast %43 : vector<1x2x4x128xf32> to vector<2x4x128xf32>
      %45 = vector.shape_cast %42 : vector<2x4x128xf32> to vector<1x2x4x128xf32>
      tpu.vector_store %arg5[%c0_25, %c0_26, %c0_27, %c0_28], %45 {strides = array<i32>} : memref<1x2x4x128xf32, #tpu.memory_space<vmem>>, vector<1x2x4x128xf32>,
    } else {
    }
    %c0 = arith.constant 0 : index
    %c0_2 = arith.constant 0 : index
    %c0_3 = arith.constant 0 : index
    %5 = vector.load %arg3[%c0, %c0_2, %c0_3] : memref<1x4x256xf32, #tpu.memory_space<vmem>>, vector<1x4x256xf32>
    %6 = vector.shape_cast %5 : vector<1x4x256xf32> to vector<4x256xf32>
    %c0_4 = arith.constant 0 : index
    %c0_5 = arith.constant 0 : index
    %c0_6 = arith.constant 0 : index
    %7 = vector.load %arg4[%c0_4, %c0_5, %c0_6] : memref<1x1x256xi32, #tpu.memory_space<vmem>>, vector<1x1x256xi32>
    %8 = vector.shape_cast %7 : vector<1x1x256xi32> to vector<1x256xi32>
    %cst = arith.constant dense<0xFF800000> : vector<256xf32>
    %9 = vector.multi_reduction <maximumf>, %6, %cst [0] : vector<4x256xf32> to vector<256xf32>
    %10 = vector.shape_cast %9 : vector<256xf32> to vector<1x256xf32>
    %11 = vector.broadcast %10 : vector<1x256xf32> to vector<4x256xf32>
    %12 = arith.subf %6, %11 : vector<4x256xf32>
    %13 = math.exp %12 : vector<4x256xf32>
    %cst_7 = arith.constant dense<0.000000e+00> : vector<256xf32>
    %14 = vector.multi_reduction <add>, %13, %cst_7 [0] : vector<4x256xf32> to vector<256xf32>
    %15 = vector.shape_cast %14 : vector<256xf32> to vector<1x256xf32>
    %16 = tpu.reciprocal %15 {approx = true} : vector<1x256xf32> -> vector<1x256xf32>
    %17 = vector.broadcast %16 : vector<1x256xf32> to vector<4x256xf32>
    %18 = arith.mulf %13, %17 : vector<4x256xf32>
    %19 = tpu.iota {dimensions = array<i32: 0>} : vector<4x256xi32>
    %20 = vector.broadcast %8 : vector<1x256xi32> to vector<4x256xi32>
    %21 = arith.cmpi eq, %19, %20 : vector<4x256xi32>
    %cst_8 = arith.constant 0.000000e+00 : f32
    %22 = vector.broadcast %cst_8 : f32 to vector<4x256xf32>
    %23 = arith.select %21, %18, %22 : vector<4x256xi1>, vector<4x256xf32>
    %c0_9 = arith.constant 0 : index
    %c0_10 = arith.constant 0 : index
    %c0_11 = arith.constant 0 : index
    %c0_12 = arith.constant 0 : index
    %24 = vector.load %arg5[%c0_9, %c0_10, %c0_11, %c0_12] : memref<1x2x4x128xf32, #tpu.memory_space<vmem>>, vector<1x1x4x128xf32>
    %25 = vector.shape_cast %24 : vector<1x1x4x128xf32> to vector<4x128xf32>
    %26 = vector.extract_strided_slice %23 {offsets = [0, 0], sizes = [4, 128], strides = [1, 1]} : vector<4x256xf32> to vector<4x128xf32>
    %27 = vector.extract_strided_slice %23 {offsets = [0, 128], sizes = [4, 128], strides = [1, 1]} : vector<4x256xf32> to vector<4x128xf32>
    %28 = arith.addf %26, %27 : vector<4x128xf32>
    %29 = arith.addf %25, %28 : vector<4x128xf32>
    %c0_13 = arith.constant 0 : index
    %c0_14 = arith.constant 0 : index
    %c0_15 = arith.constant 0 : index
    %c0_16 = arith.constant 0 : index
    %30 = vector.load %arg5[%c0_13, %c0_14, %c0_15, %c0_16] : memref<1x2x4x128xf32, #tpu.memory_space<vmem>>, vector<1x1x4x128xf32>
    %31 = vector.shape_cast %30 : vector<1x1x4x128xf32> to vector<4x128xf32>
    %32 = vector.shape_cast %29 : vector<4x128xf32> to vector<1x1x4x128xf32>
    tpu.vector_store %arg5[%c0_13, %c0_14, %c0_15, %c0_16], %32 {strides = array<i32>} : memref<1x2x4x128xf32, #tpu.memory_space<vmem>>, vector<1x1x4x128xf32>,
    %c0_17 = arith.constant 0 : index
    %c1 = arith.constant 1 : index
    %c0_18 = arith.constant 0 : index
    %c0_19 = arith.constant 0 : index
    %33 = vector.load %arg5[%c0_17, %c1, %c0_18, %c0_19] : memref<1x2x4x128xf32, #tpu.memory_space<vmem>>, vector<1x1x4x128xf32>
    %34 = vector.shape_cast %33 : vector<1x1x4x128xf32> to vector<4x128xf32>
    %35 = vector.extract_strided_slice %18 {offsets = [0, 0], sizes = [4, 128], strides = [1, 1]} : vector<4x256xf32> to vector<4x128xf32>
    %36 = vector.extract_strided_slice %18 {offsets = [0, 128], sizes = [4, 128], strides = [1, 1]} : vector<4x256xf32> to vector<4x128xf32>
    %37 = arith.addf %35, %36 : vector<4x128xf32>
    %38 = arith.addf %34, %37 : vector<4x128xf32>
    %c0_20 = arith.constant 0 : index
    %c1_21 = arith.constant 1 : index
    %c0_22 = arith.constant 0 : index
    %c0_23 = arith.constant 0 : index
    %39 = vector.load %arg5[%c0_20, %c1_21, %c0_22, %c0_23] : memref<1x2x4x128xf32, #tpu.memory_space<vmem>>, vector<1x1x4x128xf32>
    %40 = vector.shape_cast %39 : vector<1x1x4x128xf32> to vector<4x128xf32>
    %41 = vector.shape_cast %38 : vector<4x128xf32> to vector<1x1x4x128xf32>
    tpu.vector_store %arg5[%c0_20, %c1_21, %c0_22, %c0_23], %41 {strides = array<i32>} : memref<1x2x4x128xf32, #tpu.memory_space<vmem>>, vector<1x1x4x128xf32>,
    return
  }
  func.func @transform_0(%arg0: i32, %arg1: i32, %arg2: i32) -> (i32, i32, i32) {
    %c1_i32 = arith.constant 1 : i32
    %0 = arith.muli %arg0, %c1_i32 : i32
    %1 = arith.addi %0, %arg2 : i32
    %c0_i32 = arith.constant 0 : i32
    %2 = arith.minsi %1, %c0_i32 : i32
    %c0_i32_0 = arith.constant 0 : i32
    %c0_i32_1 = arith.constant 0 : i32
    return %arg1, %c0_i32_0, %2 : i32, i32, i32
  }
  func.func @transform_1(%arg0: i32, %arg1: i32, %arg2: i32) -> (i32, i32, i32) {
    %c1_i32 = arith.constant 1 : i32
    %0 = arith.muli %arg0, %c1_i32 : i32
    %1 = arith.addi %0, %arg2 : i32
    %c0_i32 = arith.constant 0 : i32
    %2 = arith.minsi %1, %c0_i32 : i32
    %c0_i32_0 = arith.constant 0 : i32
    %c0_i32_1 = arith.constant 0 : i32
    return %arg1, %c0_i32_0, %2 : i32, i32, i32
  }
  func.func @transform_2(%arg0: i32, %arg1: i32, %arg2: i32) -> (i32, i32, i32, i32) {
    %c0_i32 = arith.constant 0 : i32
    %c0_i32_0 = arith.constant 0 : i32
    %c0_i32_1 = arith.constant 0 : i32
    %c0_i32_2 = arith.constant 0 : i32
    return %arg0, %c0_i32, %c0_i32_0, %c0_i32_1 : i32, i32, i32, i32
  }
}

</mosaic_0001>

<llo_original>
// kernel: tpu_custom_call.1
$region0: #{tpu_custom_call.1}
  #allocation0 [shape = 'u32[]', space=smem, size = 0x4, offset = 0x4, fixed_abs, tag = 'smem constant byte address 0x4 - core index']
  #allocation1 [shape = 'u32[144,128]{1,0:T(1,128)}', space=vmem, size = 0x12000, scoped, tag = 'internal scratch']
  %s0 = inlined_call_operand.hbm [shape: f32[2,4,256], index: 0, kind: input, shape index: {}]
  %s1 = inlined_call_operand.hbm [shape: s32[2,1,256], index: 1, kind: input, shape index: {}]
  %s2 = inlined_call_operand.hbm [shape: f32[1,2,4,128], index: 2, kind: output, shape index: {}]
  %s3 = sld [smem:[#allocation0]]
  $region53: #{tpu_custom_call.1} parent=0
    _
  %s5 = ssub.s32 1, %s3
  %s6 = scalar_select 0, %s5, %s3
  $region1: #{tpu_custom_call.1} parent=0
    #allocation2 [shape = 'u8[8192]{0}', space=vmem, size = 0x2000, scoped, tag = 'input window, operand 0']
    #allocation3 [shape = 's32[2]{0}', space=sflag, size = 0x8, scoped, tag = 'scoped memory for tpu_custom_call.1']
    #allocation4 [shape = 's32[2]{0}', space=sflag, size = 0x8, scoped, tag = 'scoped memory for tpu_custom_call.1']
    #allocation5 [shape = 'u8[2048]{0}', space=vmem, size = 0x800, scoped, tag = 'input window, operand 1']
    #allocation6 [shape = 's32[2]{0}', space=sflag, size = 0x8, scoped, tag = 'scoped memory for tpu_custom_call.1']
    #allocation7 [shape = 'u8[4096]{0}', space=vmem, size = 0x1000, scoped, tag = 'output window, operand 0, single buffered']
    %7 = vsyncpa [#allocation3], 0
    %s8 = scalar_lea.sflag [#allocation3], 1
    %9 = vsyncpa %s8, 0
    %10 = vsyncpa [#allocation6], 0
    %s11 = scalar_lea.sflag [#allocation6], 1
    %12 = vsyncpa %s11, 0
    %13 = vsyncpa [#allocation4], 0
    loop: start=0, step=1, limit=4
    $region2: #{tpu_custom_call.1} parent=1 // loop_pre_header
      _
    $region3: #{tpu_custom_call.1} parent=1 // loop_header
      %s15 = sphi 0, %s19
      %p16 = scmp.ge.s32.totalorder %s15, 4
      %s22 = sphi 0, %s41
      %s23 = sphi 0, %s37
      %s24 = sphi 0, %s33
      %s25 = sphi 0, %s22
      %s26 = sphi 0, %s23
      %s27 = sphi 0, %s24
      %s28 = sphi 0, %s25
      %s29 = sphi 0, %s26
      %s30 = sphi 0, %s27
      %s52 = sphi 0, %s54
      %s55 = sphi 0, %s52
      %s56 = sphi 0, %s55
      %s72 = sphi 0, %s56
      %s86 = sphi 0, %s88
      %s89 = sphi 0, %s86
      %s90 = sphi 0, %s89
      %s106 = sphi 0, %s90
      %s112 = sphi 0, %s114
      %s115 = sphi 0, %s112
      %s116 = sphi 0, %s115
      %s132 = sphi 0, %s116
    $region4: #{tpu_custom_call.1} parent=1 // loop_header_branch
      %18 = sbr.rel (%p16) target = $region8
    $region5: #{tpu_custom_call.1} parent=1 // loop_body
      %s20 = ssub.s32 %s15, 1
      %s21 = ssub.s32 %s15, 2
      %s31 = sadd.s32 1, %s24
      %p32 = scmp.ge.s32.totalorder %s31, 1
      %s33 = scalar_select %p32, 0, %s31
      %s34 = sadd.s32 1, %s23
      %s35 = scalar_select %p32, %s34, %s23
      %p36 = scmp.ge.s32.totalorder %s35, 2
      %s37 = scalar_select %p36, 0, %s35
      %s38 = sadd.s32 1, %s22
      %s39 = scalar_select %p36, %s38, %s22
      %p40 = scmp.ge.s32.totalorder %s39, 1
      %s41 = scalar_select %p40, 0, %s39
      %s42 = sadd.s32 %s22, %s24
      %p43 = scmp.lt.s32.totalorder %s42, 0
      %s44 = scalar_select %p43, %s42, 0
      %s45 = sadd.s32 %s41, %s33
      %p46 = scmp.lt.s32.totalorder %s45, 0
      %s47 = scalar_select %p46, %s45, 0
      %s48 = ssub.s32 %s23, %s37
      %s49 = ssub.s32 %s44, %s47
      %s50 = sor.u32 %s48, %s49
      %p51 = scmp.eq.s32.totalorder %s50, 0
      %s53 = sadd.s32 %s52, 1
      %s54 = scalar_select %p51, %s52, %s53
      %p57 = pneg %p51
      %p58 = scmp.eq.s32.totalorder %s15, 1
      %p59 = por %p57, %p58
      %p60 = scmp.ne.s32.totalorder %s52, %s55
      %p61 = scmp.eq.s32.totalorder %s15, 0
      %p62 = por %p60, %p61
      %p63 = scmp.ne.s32.totalorder %s52, %s55
      %p64 = scmp.eq.s32.totalorder %s20, 1
      %p65 = por %p63, %p64
      %p66 = scmp.ne.s32.totalorder %s55, %s56
      %p67 = scmp.eq.s32.totalorder %s20, 0
      %p68 = por %p66, %p67
      %p69 = scmp.ne.s32.totalorder %s55, %s56
      %p70 = scmp.eq.s32.totalorder %s21, 1
      %p71 = por %p69, %p70
      %p73 = scmp.ne.s32.totalorder %s56, %s72
      %p74 = scmp.eq.s32.totalorder %s21, 0
      %p75 = por %p73, %p74
      %s76 = sadd.s32 %s22, %s24
      %p77 = scmp.lt.s32.totalorder %s76, 0
      %s78 = scalar_select %p77, %s76, 0
      %s79 = sadd.s32 %s41, %s33
      %p80 = scmp.lt.s32.totalorder %s79, 0
      %s81 = scalar_select %p80, %s79, 0
      %s82 = ssub.s32 %s23, %s37
      %s83 = ssub.s32 %s78, %s81
      %s84 = sor.u32 %s82, %s83
      %p85 = scmp.eq.s32.totalorder %s84, 0
      %s87 = sadd.s32 %s86, 1
      %s88 = scalar_select %p85, %s86, %s87
      %p91 = pneg %p85
      %p92 = scmp.eq.s32.totalorder %s15, 1
      %p93 = por %p91, %p92
      %p94 = scmp.ne.s32.totalorder %s86, %s89
      %p95 = scmp.eq.s32.totalorder %s15, 0
      %p96 = por %p94, %p95
      %p97 = scmp.ne.s32.totalorder %s86, %s89
      %p98 = scmp.eq.s32.totalorder %s20, 1
      %p99 = por %p97, %p98
      %p100 = scmp.ne.s32.totalorder %s89, %s90
      %p101 = scmp.eq.s32.totalorder %s20, 0
      %p102 = por %p100, %p101
      %p103 = scmp.ne.s32.totalorder %s89, %s90
      %p104 = scmp.eq.s32.totalorder %s21, 1
      %p105 = por %p103, %p104
      %p107 = scmp.ne.s32.totalorder %s90, %s106
      %p108 = scmp.eq.s32.totalorder %s21, 0
      %p109 = por %p107, %p108
      %s110 = ssub.s32 %s22, %s41
      %p111 = scmp.eq.s32.totalorder %s110, 0
      %s113 = sadd.s32 %s112, 1
      %s114 = scalar_select %p111, %s112, %s113
      %p117 = pneg %p111
      %p118 = scmp.eq.s32.totalorder %s15, 1
      %p119 = por %p117, %p118
      %p120 = scmp.ne.s32.totalorder %s112, %s115
      %p121 = scmp.eq.s32.totalorder %s15, 0
      %p122 = por %p120, %p121
      %p123 = scmp.ne.s32.totalorder %s112, %s115
      %p124 = scmp.eq.s32.totalorder %s20, 1
      %p125 = por %p123, %p124
      %p126 = scmp.ne.s32.totalorder %s115, %s116
      %p127 = scmp.eq.s32.totalorder %s20, 0
      %p128 = por %p126, %p127
      %p129 = scmp.ne.s32.totalorder %s115, %s116
      %p130 = scmp.eq.s32.totalorder %s21, 1
      %p131 = por %p129, %p130
      %p133 = scmp.ne.s32.totalorder %s116, %s132
      %p134 = scmp.eq.s32.totalorder %s21, 0
      %p135 = por %p133, %p134
      %p136 = scmp.le.s32.totalorder 1, %s15
      %p137 = scmp.lt.s32.totalorder %s15, 3
      %p138 = pnand %p136, %p137
      %p139 = pneg %p138
      // Predicated region
      $region9: #{tpu_custom_call.1} parent=5 // pred_check
        _
      $region10: #{tpu_custom_call.1} parent=5 // pred_check_branch
        %141 = sbr.rel (%p138) target = $region12
      $region11: #{tpu_custom_call.1} parent=5 // pred_region
        %s142 = ssub.s32 %s15, 1
      $region12: #{tpu_custom_call.1} parent=5 // pred_fallthru
        _
      %p143 = scmp.lt.s32.totalorder %s15, 2
      // Predicated region
      $region13: #{tpu_custom_call.1} parent=5 // pred_check
        %p144 = pneg %p143
      $region14: #{tpu_custom_call.1} parent=5 // pred_check_branch
        %146 = sbr.rel (%p144) target = $region16
      $region15: #{tpu_custom_call.1} parent=5 // pred_region
        // Predicated region
        $region17: #{tpu_custom_call.1} parent=15 // pred_check
          %p147 = pneg %p62
        $region18: #{tpu_custom_call.1} parent=15 // pred_check_branch
          %149 = sbr.rel (%p147) target = $region20
        $region19: #{tpu_custom_call.1} parent=15 // pred_region
          %s150 = sand.u32 %s52, 1
          %s151 = scalar_lea.sflag [#allocation3], %s150
          %s152 = sand.u32 %s52, 1
          %s153 = smul.addr %s152, 8
          %s154 = scalar_lea.vmem [#allocation2], %s153
          %s155 = sadd.s32 %s22, %s24
          %p156 = scmp.lt.s32.totalorder %s155, 0
          %s157 = scalar_select %p156, %s155, 0
          %s158 = smul.u32 2, %s157
          %s160 = ssub.s32 128, 128
          %161 = vsyncadd %s151, %s160
          %s162 = smul.addr %s23, 2
          %s163 = sadd.s32 %s158, %s162
          %s164 = smul.addr %s163, 64
          %s165 = scalar_lea.hbm %s0, %s164
          %s167 = sshll.u32 %s154, 4
          %s168 = int_to_ptr.vmem [resolvable:$true] %s167
          %170 = dma.hbm_to_vmem [thread:$0]  %s165, 128, %s168, %s151
        $region20: #{tpu_custom_call.1} parent=15 // pred_fallthru
          _
        // Predicated region
        $region21: #{tpu_custom_call.1} parent=15 // pred_check
          %p171 = pneg %p96
        $region22: #{tpu_custom_call.1} parent=15 // pred_check_branch
          %173 = sbr.rel (%p171) target = $region24
        $region23: #{tpu_custom_call.1} parent=15 // pred_region
          %s174 = sand.u32 %s86, 1
          %s175 = scalar_lea.sflag [#allocation6], %s174
          %s176 = sand.u32 %s86, 1
          %s177 = smul.addr %s176, 2
          %s178 = scalar_lea.vmem [#allocation5], %s177
          %s179 = sadd.s32 %s22, %s24
          %p180 = scmp.lt.s32.totalorder %s179, 0
          %s181 = scalar_select %p180, %s179, 0
          %s182 = smul.u32 2, %s181
          %s184 = ssub.s32 32, 32
          %185 = vsyncadd %s175, %s184
          %s186 = smul.addr %s23, 2
          %s187 = sadd.s32 %s182, %s186
          %s188 = smul.addr %s187, 16
          %s189 = scalar_lea.hbm %s1, %s188
          %s191 = sshll.u32 %s178, 4
          %s192 = int_to_ptr.vmem [resolvable:$true] %s191
          %194 = dma.hbm_to_vmem [thread:$0]  %s189, 32, %s192, %s175
        $region24: #{tpu_custom_call.1} parent=15 // pred_fallthru
          _
      $region16: #{tpu_custom_call.1} parent=5 // pred_fallthru
        _
      %p195 = scmp.le.s32.totalorder 1, %s15
      %p196 = scmp.lt.s32.totalorder %s15, 3
      %p197 = pnand %p195, %p196
      %p198 = pneg %p197
      // Predicated region
      $region25: #{tpu_custom_call.1} parent=5 // pred_check
        _
      $region26: #{tpu_custom_call.1} parent=5 // pred_check_branch
        %200 = sbr.rel (%p197) target = $region28
      $region27: #{tpu_custom_call.1} parent=5 // pred_region
        %s201 = ssub.s32 %s15, 1
        %s202 = sand.u32 %s55, 1
        %s203 = scalar_lea.sflag [#allocation3], %s202
        %s204 = sand.u32 %s55, 1
        %s205 = smul.addr %s204, 8
        %s206 = scalar_lea.vmem [#allocation2], %s205
        // Predicated region
        $region29: #{tpu_custom_call.1} parent=27 // pred_check
          %p207 = pneg %p68
        $region30: #{tpu_custom_call.1} parent=27 // pred_check_branch
          %209 = sbr.rel (%p207) target = $region32
        $region31: #{tpu_custom_call.1} parent=27 // pred_region
          %210 = dma.done %s203, 128
        $region32: #{tpu_custom_call.1} parent=27 // pred_fallthru
          _
        %s211 = sand.u32 %s89, 1
        %s212 = scalar_lea.sflag [#allocation6], %s211
        %s213 = sand.u32 %s89, 1
        %s214 = smul.addr %s213, 2
        %s215 = scalar_lea.vmem [#allocation5], %s214
        // Predicated region
        $region33: #{tpu_custom_call.1} parent=27 // pred_check
          %p216 = pneg %p102
        $region34: #{tpu_custom_call.1} parent=27 // pred_check_branch
          %218 = sbr.rel (%p216) target = $region36
        $region35: #{tpu_custom_call.1} parent=27 // pred_region
          %219 = dma.done %s212, 32
        $region36: #{tpu_custom_call.1} parent=27 // pred_fallthru
          _
        %s220 = sand.u32 %s55, 1
        %s221 = scalar_lea.sflag [#allocation3], %s220
        %s222 = sand.u32 %s55, 1
        %s223 = smul.addr %s222, 8
        %s224 = scalar_lea.vmem [#allocation2], %s223
        %p225 = pneg %p68
        %p226 = pneg %p65
        %s227 = sand.u32 %s89, 1
        %s228 = scalar_lea.sflag [#allocation6], %s227
        %s229 = sand.u32 %s89, 1
        %s230 = smul.addr %s229, 2
        %s231 = scalar_lea.vmem [#allocation5], %s230
        %p232 = pneg %p102
        %p233 = pneg %p99
        %p234 = pneg %p128
        %p235 = pneg %p125
        %s236 = sadd.s32 %s25, %s27
        %p237 = scmp.lt.s32.totalorder %s236, 0
        %s238 = scalar_select %p237, %s236, 0
        %s239 = smul.u32 2, %s238
        %s240 = sadd.s32 %s25, %s27
        %p241 = scmp.lt.s32.totalorder %s240, 0
        %s242 = scalar_select %p241, %s240, 0
        %s243 = smul.u32 2, %s242
        %p244 = scmp.eq.s32.totalorder %s26, 0
        %p245 = scmp.eq.s32.totalorder %s27, 0
        %p246 = pnand %p244, %p245
        %p247 = pneg %p246
        // Predicated region
        $region37: #{tpu_custom_call.1} parent=27 // pred_check
          _
        $region38: #{tpu_custom_call.1} parent=27 // pred_check_branch
          %249 = sbr.rel (%p246) target = $region40
        $region39: #{tpu_custom_call.1} parent=27 // pred_region
          %250 = vst [vmem:[#allocation7] sm:$0xf] 0.0
          %251 = vst [vmem:[#allocation7 + $0x4] sm:$0xf] 0.0
        $region40: #{tpu_custom_call.1} parent=27 // pred_fallthru
          _
        %v252 = vld [vmem:[%s206] sm:$0xff]
        %v253 = vld [vmem:[%s215] sm:$0x3]
        %v255 = vcombine.high %v252, %v252
        %vm257 = vcmask 1043456
        %v258 = vsel %vm257, %v252, -inf
        %v259 = vrot.slane %v258, 4
        %v260 = vmax.f32 %v258, %v259
        %v261 = vrot.slane %v260, 2
        %v262 = vmax.f32 %v260, %v261
        %v263 = vrot.slane %v262, 1
        %v264 = vmax.f32 %v262, %v263
        %v265 = vsel %vm257, %v255, -inf
        %v266 = vrot.slane %v265, 4
        %v267 = vmax.f32 %v265, %v266
        %v268 = vrot.slane %v267, 2
        %v269 = vmax.f32 %v267, %v268
        %v270 = vrot.slane %v269, 1
        %v271 = vmax.f32 %v269, %v270
        %v274 = vcombine.low %v264, %v271
        %v276 = vsub.f32 %v252, %v274
        %v277 = vmul.f32 %v276, 1.442695
        %v278 = vpow.pop %v277
        %v280 = vcombine.high %v278, %v278
        %v282 = vsel %vm257, %v278, 0.0
        %v283 = vrot.slane %v282, 4
        %v284 = vadd.f32 %v282, %v283
        %v285 = vrot.slane %v284, 2
        %v286 = vadd.f32 %v284, %v285
        %v287 = vrot.slane %v286, 1
        %v288 = vadd.f32 %v286, %v287
        %v289 = vsel %vm257, %v280, 0.0
        %v290 = vrot.slane %v289, 4
        %v291 = vadd.f32 %v289, %v290
        %v292 = vrot.slane %v291, 2
        %v293 = vadd.f32 %v291, %v292
        %v294 = vrot.slane %v293, 1
        %v295 = vadd.f32 %v293, %v294
        %v296 = vrcp.pop %v288
        %v297 = vrcp.pop %v295
        %v300 = vcombine.low %v296, %v297
        %v302 = vmul.f32 %v278, %v300
        %v303 = vlaneseq
        %v304 = vshrl.u32 %v303, 7
        %v305 = vlaneseq
        %v306 = vshrl.u32 %v305, 7
        %v307 = vsub.s32 0, %v306
        %v308 = vrot.slane %v253, %v307
        %v309 = vlaneseq
        %v310 = vshrl.u32 %v309, 7
        %v311 = vsub.s32 1, %v310
        %v312 = vrot.slane %v253, %v311
        %vm313 = vcmp.eq.s32.totalorder %v304, %v308
        %vm314 = vcmp.eq.s32.totalorder %v304, %v312
        %v316 = vcombine.high %v302, %v302
        %v318 = vsel %vm313, %v302, 0.0
        %v319 = vsel %vm314, %v316, 0.0
        %v320 = vld [vmem:[#allocation7] sm:$0xf]
        %v321 = vadd.f32 %v318, %v319
        %v322 = vadd.f32 %v320, %v321
        %323 = vst [vmem:[#allocation7] sm:$0xf] %v322
        %s324 = scalar_lea.vmem [#allocation7], 4
        %v325 = vld [vmem:[%s324] sm:$0xf]
        %v326 = vrot.slane %v302, 4
        %v328 = vadd.f32 %v302, %v326
        %v329 = vadd.f32 %v325, %v328
        %330 = vst [vmem:[%s324] sm:$0xf] %v329
        // Predicated region
        $region41: #{tpu_custom_call.1} parent=27 // pred_check
          %p331 = pneg %p125
        $region42: #{tpu_custom_call.1} parent=27 // pred_check_branch
          %333 = sbr.rel (%p331) target = $region44
        $region43: #{tpu_custom_call.1} parent=27 // pred_region
          %s335 = ssub.s32 128, 128
          %336 = vsyncadd [#allocation4], %s335
          %s337 = smul.addr %s25, 2
          %s338 = smul.addr %s337, 64
          %s339 = scalar_lea.hbm %s2, %s338
          %s340 = sshll.u32 [#allocation7], 4
          %s341 = int_to_ptr.vmem [resolvable:$true] %s340
          %346 = dma.vmem_to_hbm [thread:$0]  %s341, 128, %s339, [#allocation4], 64, 64, 4
        $region44: #{tpu_custom_call.1} parent=27 // pred_fallthru
          _
        // Predicated region
        $region45: #{tpu_custom_call.1} parent=27 // pred_check
          %p347 = pneg %p125
        $region46: #{tpu_custom_call.1} parent=27 // pred_check_branch
          %349 = sbr.rel (%p347) target = $region48
        $region47: #{tpu_custom_call.1} parent=27 // pred_region
          %350 = dma.done [#allocation4], 128
        $region48: #{tpu_custom_call.1} parent=27 // pred_fallthru
          _
      $region28: #{tpu_custom_call.1} parent=5 // pred_fallthru
        _
      %p351 = scmp.le.s32.totalorder 2, %s15
      // Predicated region
      $region49: #{tpu_custom_call.1} parent=5 // pred_check
        %p352 = pneg %p351
      $region50: #{tpu_custom_call.1} parent=5 // pred_check_branch
        %354 = sbr.rel (%p352) target = $region52
      $region51: #{tpu_custom_call.1} parent=5 // pred_region
        %s355 = ssub.s32 %s15, 2
      $region52: #{tpu_custom_call.1} parent=5 // pred_fallthru
        _
    $region6: #{tpu_custom_call.1} parent=1 // loop_footer
      %s19 = sadd.s32 1, %s15
    $region7: #{tpu_custom_call.1} parent=1 // loop_footer_branch
      %14 = sbr.rel target = $region3
    $region8: #{tpu_custom_call.1} parent=1 // loop_exit
      _
    %356 = vsyncpa [#allocation3], 1
    %s357 = scalar_lea.sflag [#allocation3], 1
    %358 = vsyncpa %s357, 1
    %359 = vsyncpa [#allocation6], 1
    %s360 = scalar_lea.sflag [#allocation6], 1
    %361 = vsyncpa %s360, 1
    %362 = vsyncpa [#allocation4], 1
    %s363 = scalar_lea.sflag [#allocation4], 1
    %364 = vsyncpa %s363, 1

</llo_original>
